<compile_context>
chip_gen: v7x
topology: tpu7x:2x2x1
jax: 0.10.0
libtpu: 0.0.40
codegen_flags: <defaults>
</compile_context>

<pallas_src>
import jax
import jax.numpy as jnp
from jax.experimental import pallas as pl
from jax.experimental.pallas import tpu as pltpu


_GROUP = 256        # rows per inner accumulation slice (multiple of 8)
_ACC_ROWS = 8       # sublane height of the VMEM partial-sum accumulators


# --------------------------------------------------------------------------
# Static helpers (run at trace time; shapes are static under jit).
# --------------------------------------------------------------------------
def _choose_lanes(n: int):
    """Lane width from {512,256,128} dividing n (copy-free reshape); else 128
    lanes with a tiny (<128 element) zero pad."""
    for lanes in (512, 256, 128):
        if n % lanes == 0:
            return lanes, 0
    return 128, (-n) % 128


def _device_kind() -> str:
    try:
        return jax.devices()[0].device_kind.lower()
    except Exception:
        return ""


def _num_tensorcores() -> int:
    """Best-effort TensorCore count of the local device; safe fallback of 1."""
    try:
        dev = jax.devices()[0]
        for attr in ("num_cores", "core_count"):
            v = getattr(dev, attr, None)
            if isinstance(v, int) and 1 <= v <= 8:
                return v
    except Exception:
        pass
    return 1


def _target_tile_rows(lanes: int, itemsize: int) -> int:
    """Rows per tile so each input tile is ~4 MiB (v6e/v7x) / ~2 MiB (v5e)."""
    kind = _device_kind()
    if ("v5 lite" in kind) or ("v5lite" in kind) or ("v5e" in kind):
        budget = 2 << 20
    else:
        budget = 4 << 20
    rows = budget // (lanes * itemsize)
    return max(_GROUP, (rows // _GROUP) * _GROUP)


# --------------------------------------------------------------------------
# Kernel
# --------------------------------------------------------------------------
def _make_mel_kernel(*, lanes, tile_rows, steps, rows, ragged, single_block,
                     n_groups):
    """Builds the mel-reduction kernel with all sizing closed over statically."""

    def kernel(pred_ref, tgt_ref, out_ref, acc_sq_ref, acc_abs_ref):
        if single_block:
            # Whole (small) slab in one block: single-shot reduce, no scratch.
            d = pred_ref[...].astype(jnp.float32) - tgt_ref[...].astype(jnp.float32)
            sum_sq = jnp.sum(d * d)
            sum_abs = jnp.sum(jnp.abs(d))
            lane = jax.lax.broadcasted_iota(jnp.int32, out_ref.shape, 2)
            out_ref[...] = jnp.where(lane == 0, sum_sq,
                                     jnp.where(lane == 1, sum_abs, 0.0)
                                     ).astype(jnp.float32)
            return

        c = pl.program_id(0)
        s = pl.program_id(1)

        @pl.when(s == 0)
        def _init():
            acc_sq_ref[...] = jnp.zeros_like(acc_sq_ref)
            acc_abs_ref[...] = jnp.zeros_like(acc_abs_ref)

        # Global row index of this tile's first row (needed for the ragged mask).
        tile_base = (c * steps + s) * tile_rows

        def body(g, carry):
            r0 = pl.multiple_of(g * _GROUP, _GROUP)
            p = pred_ref[pl.ds(r0, _GROUP), :].astype(jnp.float32)
            t = tgt_ref[pl.ds(r0, _GROUP), :].astype(jnp.float32)
            d = p - t
            if ragged:
                # Mask rows past the true row count (Pallas edge-block padding
                # contents are undefined).  `rows` is a static Python int.
                row = (jax.lax.broadcasted_iota(jnp.int32, (_GROUP, 1), 0)
                       + tile_base + r0)
                d = jnp.where(row < rows, d, 0.0)
            d3 = d.reshape(_GROUP // _ACC_ROWS, _ACC_ROWS, lanes)
            acc_sq_ref[...] += jnp.sum(d3 * d3, axis=0)       # pure VPU adds
            acc_abs_ref[...] += jnp.sum(jnp.abs(d3), axis=0)  # pure VPU adds
            return carry

        jax.lax.fori_loop(0, n_groups, body, 0, unroll=True)

        # NOTE: the output block index is constant across the (arbitrary) step
        # axis, so the block stays resident and is written back only once.
        # Keep this index_map / epilogue pairing pinned.
        @pl.when(s == pl.num_programs(1) - 1)
        def _finalize():
            sum_sq = jnp.sum(acc_sq_ref[...])     # single cross-lane reduce
            sum_abs = jnp.sum(acc_abs_ref[...])
            lane = jax.lax.broadcasted_iota(jnp.int32, out_ref.shape, 2)
            out_ref[...] = jnp.where(lane == 0, sum_sq,
                                     jnp.where(lane == 1, sum_abs, 0.0)
                                     ).astype(jnp.float32)

    return kernel


# --------------------------------------------------------------------------
# Jitted device-side wrapper
# --------------------------------------------------------------------------
@jax.jit
def _tts_loss_device(mel_output, duration_pred, mel_target, duration_target):
    mel_n = mel_output.size
    itemsize = mel_output.dtype.itemsize

    # ---- lane-dense mel slab (copy-free reshape in the common case) ----
    lanes, pad = _choose_lanes(mel_n)
    mo = mel_output.reshape(-1)
    mt = mel_target.reshape(-1)
    if pad:  # < 128 zero elements; pred/target padded identically -> diff == 0
        mo = jnp.pad(mo, (0, pad))
        mt = jnp.pad(mt, (0, pad))
    rows = (mel_n + pad) // lanes
    mo = mo.reshape(rows, lanes)
    mt = mt.reshape(rows, lanes)

    # ---- tiling / grid (all static) ----
    if rows <= _GROUP:
        single_block = True
        tile_rows, total_blocks, num_chunks, steps = rows, 1, 1, 1
        ragged, n_groups = False, 1
    else:
        single_block = False
        tile_rows = min(_target_tile_rows(lanes, itemsize),
                        (rows // _GROUP) * _GROUP)
        total_blocks = pl.cdiv(rows, tile_rows)
        cores = _num_tensorcores()
        num_chunks = 2 if (cores >= 2 and total_blocks >= 2
                           and total_blocks % 2 == 0) else 1
        steps = total_blocks // num_chunks
        ragged = (rows % tile_rows) != 0
        n_groups = tile_rows // _GROUP

    kernel = _make_mel_kernel(lanes=lanes, tile_rows=tile_rows, steps=steps,
                              rows=rows, ragged=ragged,
                              single_block=single_block, n_groups=n_groups)

    mel_spec = pl.BlockSpec((tile_rows, lanes), lambda c, s: (c * steps + s, 0))
    out_spec = pl.BlockSpec((1, _ACC_ROWS, 128), lambda c, s: (c, 0, 0))

    # VMEM budget: 2 inputs x 2 buffers x tile + scratch/temps margin.
    tile_bytes = tile_rows * lanes * itemsize
    vmem_limit = int(4 * tile_bytes + (16 << 20))

    cost = pl.CostEstimate(
        flops=5 * rows * lanes,
        transcendentals=0,
        bytes_accessed=2 * rows * lanes * itemsize
        + num_chunks * _ACC_ROWS * 128 * 4,
    )

    partials = pl.pallas_call(
        kernel,
        out_shape=jax.ShapeDtypeStruct((num_chunks, _ACC_ROWS, 128), jnp.float32),
        grid_spec=pltpu.PrefetchScalarGridSpec(
            num_scalar_prefetch=0,
            grid=(num_chunks, steps),
            in_specs=[mel_spec, mel_spec],
            out_specs=out_spec,
            scratch_shapes=[pltpu.VMEM((_ACC_ROWS, lanes), jnp.float32),
                            pltpu.VMEM((_ACC_ROWS, lanes), jnp.float32)]),
        compiler_params=pltpu.CompilerParams(
            dimension_semantics=("parallel", "arbitrary"),
            vmem_limit_bytes=vmem_limit),
        cost_estimate=cost,
    )(mo, mt)

    sum_sq = jnp.sum(partials[:, 0, 0])
    sum_abs = jnp.sum(partials[:, 0, 1])

    inv_n = 1.0 / mel_n                     # mean over the TRUE element count
    mel_loss = sum_sq * inv_n + 0.5 * (sum_abs * inv_n)

    # Duration tensors are a few KiB -> plain JAX (review item).
    dd = duration_pred.astype(jnp.float32) - duration_target.astype(jnp.float32)
    duration_loss = jnp.mean(dd * dd)

    total = mel_loss + duration_loss
    return total, jnp.stack([mel_loss, duration_loss, total])


def tts_loss(mel_output, duration_pred, mel_target, duration_target):
    """Returns (total_loss device scalar, loss_dict of python floats)."""
    total, packed = _tts_loss_device(mel_output, duration_pred,
                                     mel_target, duration_target)
    # Single blocking device->host sync for all three .item()-style values.
    mel_f, dur_f, total_f = (float(v) for v in jax.device_get(packed))
    return total, {"mel_loss": mel_f,
                   "duration_loss": dur_f,
                   "total_loss": total_f}


# --------------------------------------------------------------------------
# Self-test
# --------------------------------------------------------------------------
def _ref_losses(mel_output, duration_pred, mel_target, duration_target):
    d = mel_output.astype(jnp.float32) - mel_target.astype(jnp.float32)
    mel = jnp.mean(d * d) + 0.5 * jnp.mean(jnp.abs(d))
    dd = duration_pred.astype(jnp.float32) - duration_target.astype(jnp.float32)
    dur = jnp.mean(dd * dd)
    return float(mel), float(dur), float(mel + dur)


if __name__ == "__main__":
    root = jax.random.PRNGKey(0)

    # (B, T, n_mels): tiny spec-sized case (single-block path), plus two larger
    # cases exercising the tiled path (ragged mask, flat-pad, multi-group loop).
    cases = [
        (2, 8, 32),
        (4, 512, 80),
        (3, 700, 81),
    ]

    tol = 2e-3
    for idx, (B, T, n_mels) in enumerate(cases):
        k1, k2, k3, k4 = jax.random.split(jax.random.fold_in(root, idx), 4)
        mel_output = jax.random.normal(k1, (B, T, n_mels), dtype=jnp.float32)
        mel_target = jax.random.normal(k2, (B, T, n_mels), dtype=jnp.float32)
        duration_pred = jax.random.normal(k3, (B, T), dtype=jnp.float32)
        duration_target = jax.random.normal(k4, (B, T), dtype=jnp.float32)

        total_loss, loss_dict = tts_loss(mel_output, duration_pred,
                                         mel_target, duration_target)
        jax.block_until_ready(total_loss)

        mel_ref, dur_ref, total_ref = _ref_losses(mel_output, duration_pred,
                                                  mel_target, duration_target)
        assert abs(loss_dict["mel_loss"] - mel_ref) < tol, \
            (idx, loss_dict["mel_loss"], mel_ref)
        assert abs(loss_dict["duration_loss"] - dur_ref) < tol, \
            (idx, loss_dict["duration_loss"], dur_ref)
        assert abs(float(total_loss) - total_ref) < tol, \
            (idx, float(total_loss), total_ref)

    print("KERNEL_OK")
</pallas_src>

<mosaic_0001>
module attributes {stable_mosaic.version = 11 : i64} {
  func.func @kernel(%arg0: i32, %arg1: i32, %arg2: memref<1x512xf32, #tpu.memory_space<vmem>>, %arg3: memref<1x512xf32, #tpu.memory_space<vmem>>, %arg4: memref<1x8x128xf32, #tpu.memory_space<vmem>>, %arg5: memref<8x512xf32, #tpu.memory_space<vmem>>, %arg6: memref<8x512xf32, #tpu.memory_space<vmem>>) attributes {dimension_semantics = [#tpu.dimension_semantics<parallel>, #tpu.dimension_semantics<arbitrary>], iteration_bounds = array<i64: 1, 1>, scalar_prefetch = 0 : i64, scratch_operands = 2 : i64, tpu.core_type = #tpu.core_type<tc>, window_params = [{transform_indices = @transform_0, window_bounds = array<i64: 1, 512>}, {transform_indices = @transform_1, window_bounds = array<i64: 1, 512>}, {transform_indices = @transform_2, window_bounds = array<i64: 1, 8, 128>}]} {
    %c0 = arith.constant 0 : index
    %c0_0 = arith.constant 0 : index
    %0 = vector.load %arg2[%c0, %c0_0] : memref<1x512xf32, #tpu.memory_space<vmem>>, vector<1x512xf32>
    %c0_1 = arith.constant 0 : index
    %c0_2 = arith.constant 0 : index
    %1 = vector.load %arg3[%c0_1, %c0_2] : memref<1x512xf32, #tpu.memory_space<vmem>>, vector<1x512xf32>
    %2 = arith.subf %0, %1 : vector<1x512xf32>
    %3 = arith.mulf %2, %2 : vector<1x512xf32>
    %4 = vector.shape_cast %3 : vector<1x512xf32> to vector<1x1x512xf32>
    %cst = arith.constant dense<0.000000e+00> : vector<1xf32>
    %5 = vector.multi_reduction <add>, %4, %cst [1, 2] : vector<1x1x512xf32> to vector<1xf32>
    %6 = vector.shape_cast %5 : vector<1xf32> to vector<1x1x1xf32>
    %7 = vector.extract %6[0, 0, 0] : f32 from vector<1x1x1xf32>
    %8 = math.absf %2 : vector<1x512xf32>
    %9 = vector.shape_cast %8 : vector<1x512xf32> to vector<1x1x512xf32>
    %cst_3 = arith.constant dense<0.000000e+00> : vector<1xf32>
    %10 = vector.multi_reduction <add>, %9, %cst_3 [1, 2] : vector<1x1x512xf32> to vector<1xf32>
    %11 = vector.shape_cast %10 : vector<1xf32> to vector<1x1x1xf32>
    %12 = vector.extract %11[0, 0, 0] : f32 from vector<1x1x1xf32>
    %13 = tpu.iota {dimensions = array<i32: 2>} : vector<1x8x128xi32>
    %c0_i32 = arith.constant 0 : i32
    %14 = vector.broadcast %c0_i32 : i32 to vector<1x8x128xi32>
    %15 = arith.cmpi eq, %13, %14 : vector<1x8x128xi32>
    %c1_i32 = arith.constant 1 : i32
    %16 = vector.broadcast %c1_i32 : i32 to vector<1x8x128xi32>
    %17 = arith.cmpi eq, %13, %16 : vector<1x8x128xi32>
    %cst_4 = arith.constant 0.000000e+00 : f32
    %18 = vector.broadcast %12 : f32 to vector<1x8x128xf32>
    %19 = vector.broadcast %cst_4 : f32 to vector<1x8x128xf32>
    %20 = arith.select %17, %18, %19 : vector<1x8x128xi1>, vector<1x8x128xf32>
    %21 = vector.broadcast %7 : f32 to vector<1x8x128xf32>
    %22 = arith.select %15, %21, %20 : vector<1x8x128xi1>, vector<1x8x128xf32>
    %c0_5 = arith.constant 0 : index
    %c0_6 = arith.constant 0 : index
    %c0_7 = arith.constant 0 : index
    %23 = vector.load %arg4[%c0_5, %c0_6, %c0_7] : memref<1x8x128xf32, #tpu.memory_space<vmem>>, vector<1x8x128xf32>
    tpu.vector_store %arg4[%c0_5, %c0_6, %c0_7], %22 {strides = array<i32>} : memref<1x8x128xf32, #tpu.memory_space<vmem>>, vector<1x8x128xf32>,
    return
  }
  func.func @transform_0(%arg0: i32, %arg1: i32) -> (i32, i32) {
    %c1_i32 = arith.constant 1 : i32
    %0 = arith.muli %arg0, %c1_i32 : i32
    %1 = arith.addi %0, %arg1 : i32
    %c0_i32 = arith.constant 0 : i32
    %c0_i32_0 = arith.constant 0 : i32
    return %1, %c0_i32 : i32, i32
  }
  func.func @transform_1(%arg0: i32, %arg1: i32) -> (i32, i32) {
    %c1_i32 = arith.constant 1 : i32
    %0 = arith.muli %arg0, %c1_i32 : i32
    %1 = arith.addi %0, %arg1 : i32
    %c0_i32 = arith.constant 0 : i32
    %c0_i32_0 = arith.constant 0 : i32
    return %1, %c0_i32 : i32, i32
  }
  func.func @transform_2(%arg0: i32, %arg1: i32) -> (i32, i32, i32) {
    %c0_i32 = arith.constant 0 : i32
    %c0_i32_0 = arith.constant 0 : i32
    %c0_i32_1 = arith.constant 0 : i32
    return %arg0, %c0_i32, %c0_i32_0 : i32, i32, i32
  }
}

</mosaic_0001>

<llo_original>
// kernel: _tts_loss_device.1
$region0: #{_tts_loss_device.1}
  #allocation0 [shape = 'u32[]', space=smem, size = 0x4, offset = 0x4, fixed_abs, tag = 'smem constant byte address 0x4 - core index']
  #allocation1 [shape = 'u32[144,128]{1,0:T(1,128)}', space=vmem, size = 0x12000, scoped, tag = 'internal scratch']
  #allocation2 [shape = 'f32[8,512]{1,0:T(8,128)}', space=vmem, size = 0x4000, scoped, tag = 'scratch operand']
  #allocation3 [shape = 'f32[8,512]{1,0:T(8,128)}', space=vmem, size = 0x4000, scoped, tag = 'scratch operand']
  %s0 = inlined_call_operand.vmem [shape: f32[1,512], index: 0, kind: input, shape index: {}]
  %s1 = inlined_call_operand.vmem [shape: f32[1,512], index: 1, kind: input, shape index: {}]
  %s2 = inlined_call_operand.vmem [shape: f32[1,8,128], index: 2, kind: output, shape index: {}]
  %s3 = sld [smem:[#allocation0]]
  $region18: #{_tts_loss_device.1} parent=0
    _
  %s5 = ssub.s32 1, %s3
  %s6 = scalar_select 0, %s5, %s3
  // Predicated region
  $region2: #{_tts_loss_device.1} parent=0 // pred_check
    _
  $region3: #{_tts_loss_device.1} parent=0 // pred_check_branch
    %8 = sbr.rel (0) target = $region5
  $region4: #{_tts_loss_device.1} parent=0 // pred_region
    %s9 = sadd.s32 0, 0
    %p10 = scmp.lt.s32.totalorder %s9, 0
    %s11 = scalar_select %p10, %s9, 0
    %s12 = smul.addr %s11, 4
    %s13 = scalar_lea.vmem %s0, %s12
    %s14 = sadd.s32 0, 0
  $region5: #{_tts_loss_device.1} parent=0 // pred_fallthru
    _
  // Predicated region
  $region6: #{_tts_loss_device.1} parent=0 // pred_check
    _
  $region7: #{_tts_loss_device.1} parent=0 // pred_check_branch
    %16 = sbr.rel (0) target = $region9
  $region8: #{_tts_loss_device.1} parent=0 // pred_region
    %s17 = sadd.s32 0, 0
    %p18 = scmp.lt.s32.totalorder %s17, 0
    %s19 = scalar_select %p18, %s17, 0
    %s20 = smul.addr %s19, 4
    %s21 = scalar_lea.vmem %s1, %s20
    %s22 = sadd.s32 0, 0
  $region9: #{_tts_loss_device.1} parent=0 // pred_fallthru
    _
  %s23 = sadd.s32 0, 0
  %p24 = scmp.lt.s32.totalorder %s23, 0
  %s25 = scalar_select %p24, %s23, 0
  %s26 = smul.addr %s25, 4
  %s27 = scalar_lea.vmem %s0, %s26
  %s28 = sadd.s32 0, 0
  %p29 = scmp.lt.s32.totalorder %s28, 0
  %s30 = scalar_select %p29, %s28, 0
  %s31 = smul.addr %s30, 4
  %s32 = scalar_lea.vmem %s1, %s31
  %s33 = sadd.s32 0, 0
  %p34 = scmp.lt.s32.totalorder %s33, 0
  %s35 = scalar_select %p34, %s33, 0
  %s36 = smul.addr %s35, 4
  %s37 = scalar_lea.vmem %s0, %s36
  %s38 = sadd.s32 0, 0
  %s39 = sadd.s32 0, 0
  %p40 = scmp.lt.s32.totalorder %s39, 0
  %s41 = scalar_select %p40, %s39, 0
  %s42 = smul.addr %s41, 4
  %s43 = scalar_lea.vmem %s1, %s42
  %s44 = sadd.s32 0, 0
  %v45 = vld [vmem:[%s37] sm:$0xf]
  %v46 = vld [vmem:[%s43] sm:$0xf]
  %v47 = vsub.f32 %v45, %v46
  %v48 = vmul.f32 %v47, %v47
  %v50 = vlaneseq
  %v51 = vshrl.u32 %v50, 7
  %v52 = vsub.s32 0, %v51
  %v53 = vrot.slane %v48, %v52
  %v54 = vlaneseq
  %v55 = vshrl.u32 %v54, 7
  %v56 = vsub.s32 1, %v55
  %v57 = vrot.slane %v48, %v56
  %v58 = vlaneseq
  %v59 = vshrl.u32 %v58, 7
  %v60 = vsub.s32 2, %v59
  %v61 = vrot.slane %v48, %v60
  %v62 = vlaneseq
  %v63 = vshrl.u32 %v62, 7
  %v64 = vsub.s32 3, %v63
  %v65 = vrot.slane %v48, %v64
  %vm70 = vcmask 1040384
  %v71 = vsel %vm70, %v53, 0.0
  %v72 = vsel %vm70, %v57, 0.0
  %v73 = vadd.f32 %v71, %v72
  %v74 = vsel %vm70, %v61, 0.0
  %v75 = vadd.f32 %v73, %v74
  %v76 = vsel %vm70, %v65, 0.0
  %v77 = vadd.f32 %v75, %v76
  %78 = vadd.xlane.f32.xlu0 %v77
  %v79 = vpop.xlane.xlu0 %78
  %v80 = vrot.slane %v79, 4
  %v81 = vadd.f32 %v79, %v80
  %v82 = vrot.slane %v81, 2
  %v83 = vadd.f32 %v81, %v82
  %v84 = vrot.slane %v83, 1
  %v85 = vadd.f32 %v83, %v84
  %s86 = vtos %v85
  %v87 = vand.u32 2147483647, %v47
  %v89 = vlaneseq
  %v90 = vshrl.u32 %v89, 7
  %v91 = vsub.s32 0, %v90
  %v92 = vrot.slane %v87, %v91
  %v93 = vlaneseq
  %v94 = vshrl.u32 %v93, 7
  %v95 = vsub.s32 1, %v94
  %v96 = vrot.slane %v87, %v95
  %v97 = vlaneseq
  %v98 = vshrl.u32 %v97, 7
  %v99 = vsub.s32 2, %v98
  %v100 = vrot.slane %v87, %v99
  %v101 = vlaneseq
  %v102 = vshrl.u32 %v101, 7
  %v103 = vsub.s32 3, %v102
  %v104 = vrot.slane %v87, %v103
  %v109 = vsel %vm70, %v92, 0.0
  %v110 = vsel %vm70, %v96, 0.0
  %v111 = vadd.f32 %v109, %v110
  %v112 = vsel %vm70, %v100, 0.0
  %v113 = vadd.f32 %v111, %v112
  %v114 = vsel %vm70, %v104, 0.0
  %v115 = vadd.f32 %v113, %v114
  %116 = vadd.xlane.f32.xlu0 %v115
  %v117 = vpop.xlane.xlu0 %116
  %v118 = vrot.slane %v117, 4
  %v119 = vadd.f32 %v117, %v118
  %v120 = vrot.slane %v119, 2
  %v121 = vadd.f32 %v119, %v120
  %v122 = vrot.slane %v121, 1
  %v123 = vadd.f32 %v121, %v122
  %s124 = vtos %v123
  %v125 = vlaneseq
  %v126 = vand.u32 %v125, 127
  %vm127 = vcmp.eq.s32.totalorder %v126, 0
  %vm128 = vcmp.eq.s32.totalorder %v126, 1
  %v129 = vstv %s124
  %v130 = vsel %vm128, %v129, 0.0
  %v131 = vstv %s86
  %v132 = vsel %vm127, %v131, %v130
  %133 = vst [vmem:[%s2] sm:$0xff] %v132
  // Predicated region
  $region10: #{_tts_loss_device.1} parent=0 // pred_check
    _
  $region11: #{_tts_loss_device.1} parent=0 // pred_check_branch
    %135 = sbr.rel (0) target = $region13
  $region12: #{_tts_loss_device.1} parent=0 // pred_region
    _
  $region13: #{_tts_loss_device.1} parent=0 // pred_fallthru
    _
  // Predicated region
  $region14: #{_tts_loss_device.1} parent=0 // pred_check
    _
  $region15: #{_tts_loss_device.1} parent=0 // pred_check_branch
    %137 = sbr.rel (0) target = $region17
  $region16: #{_tts_loss_device.1} parent=0 // pred_region
    _
  $region17: #{_tts_loss_device.1} parent=0 // pred_fallthru
    _

</llo_original>
